<compile_context>
chip_gen: v5e
topology: v5e:2x2
jax: 0.10.0
libtpu: 0.0.40
codegen_flags: <defaults>
</compile_context>

<pallas_src>
import jax
import jax.numpy as jnp
from jax import lax
from jax.experimental import pallas as pl
from jax.experimental.pallas import tpu as pltpu


def _round_up(n, m):
    return ((n + m - 1) // m) * m


def rbm_kernel(x_ref, w_ref, hb_ref, vb_ref, u_ref, vprob_ref, hstate_ref):
    # hidden_prob = sigmoid(x @ W + h_bias)   -- bf16 MXU, f32 accumulate.
    h_logits = jnp.dot(
        x_ref[...], w_ref[...], preferred_element_type=jnp.float32
    ) + hb_ref[...]
    h_prob = 0.5 * (jnp.tanh(0.5 * h_logits) + 1.0)          # sigmoid, 1 EUP op

    # hidden_state = bernoulli(hidden_prob): threshold externally supplied
    # uniform [0,1) draws against the probability.
    h_state = (u_ref[...] < h_prob).astype(jnp.float32)       # {0, 1}
    hstate_ref[...] = h_state

    # visible_prob = sigmoid(hidden_state @ W.T + v_bias); contract on the
    # last dim of both operands so the MXU consumes W directly (no transpose).
    v_logits = lax.dot_general(
        h_state.astype(jnp.bfloat16), w_ref[...],
        dimension_numbers=(((1,), (1,)), ((), ())),
        preferred_element_type=jnp.float32,
    ) + vb_ref[...]
    vprob_ref[...] = 0.5 * (jnp.tanh(0.5 * v_logits) + 1.0)


def rbm_forward(x, W, v_bias, h_bias, key, block_b=256):
    B, V = x.shape
    H = W.shape[1]

    # Batch tile: multiple of 16 (bf16 sublane packing); pad batch to fit.
    TB = min(block_b, _round_up(B, 16))
    Bp = _round_up(B, TB)

    x_p = jnp.zeros((Bp, V), jnp.bfloat16).at[:B].set(x.astype(jnp.bfloat16))
    w_bf = W.astype(jnp.bfloat16)
    hb2 = h_bias.reshape(1, H).astype(jnp.float32)
    vb2 = v_bias.reshape(1, V).astype(jnp.float32)
    u = jax.random.uniform(key, (Bp, H), dtype=jnp.float32)   # Bernoulli draws

    grid = (Bp // TB,)

    cost = pl.CostEstimate(
        flops=4 * Bp * V * H,                     # two (Bp,V)x(V,H)-sized matmuls
        transcendentals=Bp * (V + H),             # one tanh per output element
        bytes_accessed=(x_p.size * 2 + w_bf.size * 2 + hb2.size * 4
                        + vb2.size * 4 + u.size * 4
                        + Bp * V * 4 + Bp * H * 4),
    )

    grid_spec = pltpu.PrefetchScalarGridSpec(
        num_scalar_prefetch=0,
        grid=grid,
        in_specs=[
            pl.BlockSpec((TB, V), lambda b: (b, 0)),   # x: streamed per tile
            pl.BlockSpec((V, H), lambda b: (0, 0)),    # W: resident
            pl.BlockSpec((1, H), lambda b: (0, 0)),    # h_bias: resident
            pl.BlockSpec((1, V), lambda b: (0, 0)),    # v_bias: resident
            pl.BlockSpec((TB, H), lambda b: (b, 0)),   # uniforms: streamed
        ],
        out_specs=[
            pl.BlockSpec((TB, V), lambda b: (b, 0)),   # visible_prob
            pl.BlockSpec((TB, H), lambda b: (b, 0)),   # hidden_state
        ],
    )

    visible_prob, hidden_state = pl.pallas_call(
        rbm_kernel,
        grid_spec=grid_spec,
        out_shape=(
            jax.ShapeDtypeStruct((Bp, V), jnp.float32),
            jax.ShapeDtypeStruct((Bp, H), jnp.float32),
        ),
        compiler_params=pltpu.CompilerParams(
            dimension_semantics=("parallel",),         # megacore shard on v7x
            vmem_limit_bytes=64 * 1024 * 1024,
        ),
        cost_estimate=cost,
    )(x_p, w_bf, hb2, vb2, u)

    return visible_prob[:B], hidden_state[:B]


if __name__ == "__main__":
    # Deterministic synthetic parameters / inputs (no checkpoint).
    key = jax.random.PRNGKey(0)
    k1, k2, k3, k4, k5 = jax.random.split(key, 5)

    batch, visible_size, hidden_size = 32, 256, 128   # lane/sublane aligned
    x = jax.random.normal(k1, (batch, visible_size), dtype=jnp.float32)
    W = jax.random.normal(k2, (visible_size, hidden_size), dtype=jnp.float32)
    v_bias = jax.random.normal(k3, (visible_size,), dtype=jnp.float32)
    h_bias = jax.random.normal(k4, (hidden_size,), dtype=jnp.float32)

    # block_b=16 -> 2 batch tiles even at this small demo size (exercises
    # pipelining and the parallel grid axis).
    visible_prob, hidden_state = rbm_forward(x, W, v_bias, h_bias, k5, block_b=16)
    jax.block_until_ready((visible_prob, hidden_state))

    # Sanity checks: shapes, binary samples, valid probabilities.
    assert visible_prob.shape == (batch, visible_size)
    assert hidden_state.shape == (batch, hidden_size)
    assert bool(jnp.all((hidden_state == 0.0) | (hidden_state == 1.0)))
    assert bool(jnp.all((visible_prob >= 0.0) & (visible_prob <= 1.0)))

    # Cross-check visible_prob against an f32 reference computed from the
    # sampled hidden_state (bf16 matmul => loose tolerance).
    vprob_ref = jax.nn.sigmoid(hidden_state @ W.T + v_bias)
    assert bool(jnp.max(jnp.abs(vprob_ref - visible_prob)) < 0.05)

    print("KERNEL_OK")
</pallas_src>

<mosaic_0001>
module attributes {stable_mosaic.version = 11 : i64} {
  func.func @rbm_kernel(%arg0: i32, %arg1: memref<16x256xbf16, #tpu.memory_space<vmem>>, %arg2: memref<256x128xbf16, #tpu.memory_space<vmem>>, %arg3: memref<1x128xf32, #tpu.memory_space<vmem>>, %arg4: memref<1x256xf32, #tpu.memory_space<vmem>>, %arg5: memref<16x128xf32, #tpu.memory_space<vmem>>, %arg6: memref<16x256xf32, #tpu.memory_space<vmem>>, %arg7: memref<16x128xf32, #tpu.memory_space<vmem>>) attributes {dimension_semantics = [#tpu.dimension_semantics<parallel>], iteration_bounds = array<i64: 2>, scalar_prefetch = 0 : i64, scratch_operands = 0 : i64, tpu.core_type = #tpu.core_type<tc>, window_params = [{transform_indices = @transform_0, window_bounds = array<i64: 16, 256>}, {pipeline_mode = #tpu.pipeline_mode<synchronous>, transform_indices = @transform_1, window_bounds = array<i64: 256, 128>}, {pipeline_mode = #tpu.pipeline_mode<synchronous>, transform_indices = @transform_2, window_bounds = array<i64: 1, 128>}, {pipeline_mode = #tpu.pipeline_mode<synchronous>, transform_indices = @transform_3, window_bounds = array<i64: 1, 256>}, {transform_indices = @transform_4, window_bounds = array<i64: 16, 128>}, {transform_indices = @transform_5, window_bounds = array<i64: 16, 256>}, {transform_indices = @transform_6, window_bounds = array<i64: 16, 128>}]} {
    %c0 = arith.constant 0 : index
    %c0_0 = arith.constant 0 : index
    %0 = vector.load %arg1[%c0, %c0_0] : memref<16x256xbf16, #tpu.memory_space<vmem>>, vector<16x256xbf16>
    %c0_1 = arith.constant 0 : index
    %c0_2 = arith.constant 0 : index
    %1 = vector.load %arg2[%c0_1, %c0_2] : memref<256x128xbf16, #tpu.memory_space<vmem>>, vector<256x128xbf16>
    %cst = arith.constant dense<0.000000e+00> : vector<16x128xf32>
    %2 = tpu.matmul %0, %1, %cst {dimension_numbers = #tpu.dot_dimension_numbers<[1], [0], [0], [1], [0, 0, 1, 1], [], []>} : vector<16x256xbf16>, vector<256x128xbf16>, vector<16x128xf32> -> vector<16x128xf32>
    %c0_3 = arith.constant 0 : index
    %c0_4 = arith.constant 0 : index
    %3 = vector.load %arg3[%c0_3, %c0_4] : memref<1x128xf32, #tpu.memory_space<vmem>>, vector<1x128xf32>
    %4 = vector.broadcast %3 : vector<1x128xf32> to vector<16x128xf32>
    %5 = arith.addf %2, %4 : vector<16x128xf32>
    %cst_5 = arith.constant 5.000000e-01 : f32
    %6 = vector.broadcast %cst_5 : f32 to vector<16x128xf32>
    %7 = arith.mulf %6, %5 : vector<16x128xf32>
    %8 = math.tanh %7 : vector<16x128xf32>
    %cst_6 = arith.constant 1.000000e+00 : f32
    %9 = vector.broadcast %cst_6 : f32 to vector<16x128xf32>
    %10 = arith.addf %8, %9 : vector<16x128xf32>
    %cst_7 = arith.constant 5.000000e-01 : f32
    %11 = vector.broadcast %cst_7 : f32 to vector<16x128xf32>
    %12 = arith.mulf %11, %10 : vector<16x128xf32>
    %c0_8 = arith.constant 0 : index
    %c0_9 = arith.constant 0 : index
    %13 = vector.load %arg5[%c0_8, %c0_9] : memref<16x128xf32, #tpu.memory_space<vmem>>, vector<16x128xf32>
    %14 = arith.cmpf olt, %13, %12 : vector<16x128xf32>
    %15 = arith.extui %14 : vector<16x128xi1> to vector<16x128xi32>
    %16 = arith.sitofp %15 : vector<16x128xi32> to vector<16x128xf32>
    %c0_10 = arith.constant 0 : index
    %c0_11 = arith.constant 0 : index
    %17 = vector.load %arg7[%c0_10, %c0_11] : memref<16x128xf32, #tpu.memory_space<vmem>>, vector<16x128xf32>
    tpu.vector_store %arg7[%c0_10, %c0_11], %16 {strides = array<i32>} : memref<16x128xf32, #tpu.memory_space<vmem>>, vector<16x128xf32>,
    %18 = arith.truncf %16 : vector<16x128xf32> to vector<16x128xbf16>
    %c0_12 = arith.constant 0 : index
    %c0_13 = arith.constant 0 : index
    %19 = vector.load %arg2[%c0_12, %c0_13] : memref<256x128xbf16, #tpu.memory_space<vmem>>, vector<256x128xbf16>
    %cst_14 = arith.constant dense<0.000000e+00> : vector<16x256xf32>
    %20 = tpu.matmul %18, %19, %cst_14 {dimension_numbers = #tpu.dot_dimension_numbers<[1], [1], [0], [0], [0, 0, 1, 0], [], []>} : vector<16x128xbf16>, vector<256x128xbf16>, vector<16x256xf32> -> vector<16x256xf32>
    %c0_15 = arith.constant 0 : index
    %c0_16 = arith.constant 0 : index
    %21 = vector.load %arg4[%c0_15, %c0_16] : memref<1x256xf32, #tpu.memory_space<vmem>>, vector<1x256xf32>
    %22 = vector.broadcast %21 : vector<1x256xf32> to vector<16x256xf32>
    %23 = arith.addf %20, %22 : vector<16x256xf32>
    %cst_17 = arith.constant 5.000000e-01 : f32
    %24 = vector.broadcast %cst_17 : f32 to vector<16x256xf32>
    %25 = arith.mulf %24, %23 : vector<16x256xf32>
    %26 = math.tanh %25 : vector<16x256xf32>
    %cst_18 = arith.constant 1.000000e+00 : f32
    %27 = vector.broadcast %cst_18 : f32 to vector<16x256xf32>
    %28 = arith.addf %26, %27 : vector<16x256xf32>
    %cst_19 = arith.constant 5.000000e-01 : f32
    %29 = vector.broadcast %cst_19 : f32 to vector<16x256xf32>
    %30 = arith.mulf %29, %28 : vector<16x256xf32>
    %c0_20 = arith.constant 0 : index
    %c0_21 = arith.constant 0 : index
    %31 = vector.load %arg6[%c0_20, %c0_21] : memref<16x256xf32, #tpu.memory_space<vmem>>, vector<16x256xf32>
    tpu.vector_store %arg6[%c0_20, %c0_21], %30 {strides = array<i32>} : memref<16x256xf32, #tpu.memory_space<vmem>>, vector<16x256xf32>,
    return
  }
  func.func @transform_0(%arg0: i32) -> (i32, i32) {
    %c0_i32 = arith.constant 0 : i32
    %c0_i32_0 = arith.constant 0 : i32
    return %arg0, %c0_i32 : i32, i32
  }
  func.func @transform_1(%arg0: i32) -> (i32, i32) {
    %c0_i32 = arith.constant 0 : i32
    %c0_i32_0 = arith.constant 0 : i32
    %c0_i32_1 = arith.constant 0 : i32
    return %c0_i32, %c0_i32_0 : i32, i32
  }
  func.func @transform_2(%arg0: i32) -> (i32, i32) {
    %c0_i32 = arith.constant 0 : i32
    %c0_i32_0 = arith.constant 0 : i32
    %c0_i32_1 = arith.constant 0 : i32
    return %c0_i32, %c0_i32_0 : i32, i32
  }
  func.func @transform_3(%arg0: i32) -> (i32, i32) {
    %c0_i32 = arith.constant 0 : i32
    %c0_i32_0 = arith.constant 0 : i32
    %c0_i32_1 = arith.constant 0 : i32
    return %c0_i32, %c0_i32_0 : i32, i32
  }
  func.func @transform_4(%arg0: i32) -> (i32, i32) {
    %c0_i32 = arith.constant 0 : i32
    %c0_i32_0 = arith.constant 0 : i32
    return %arg0, %c0_i32 : i32, i32
  }
  func.func @transform_5(%arg0: i32) -> (i32, i32) {
    %c0_i32 = arith.constant 0 : i32
    %c0_i32_0 = arith.constant 0 : i32
    return %arg0, %c0_i32 : i32, i32
  }
  func.func @transform_6(%arg0: i32) -> (i32, i32) {
    %c0_i32 = arith.constant 0 : i32
    %c0_i32_0 = arith.constant 0 : i32
    return %arg0, %c0_i32 : i32, i32
  }
}

</mosaic_0001>

<llo_original>
// kernel: tpu_custom_call.1
$region0: #{tpu_custom_call.1}
  #allocation0 [shape = 'u32[]', space=smem, size = 0x4, offset = 0x4, fixed_abs, tag = 'smem constant byte address 0x4 - core index']
  #allocation1 [shape = 'u32[72,128]{1,0:T(1,128)}', space=vmem, size = 0x9000, scoped, tag = 'internal scratch']
  %s0 = inlined_call_operand.hbm [shape: bf16[32,256], index: 0, kind: input, shape index: {}]
  %s1 = inlined_call_operand.hbm [shape: bf16[256,128], index: 1, kind: input, shape index: {}]
  %s2 = inlined_call_operand.hbm [shape: f32[1,128], index: 2, kind: input, shape index: {}]
  %s3 = inlined_call_operand.vmem [shape: f32[1,256], index: 3, kind: input, shape index: {}]
  %s4 = inlined_call_operand.hbm [shape: f32[32,128], index: 4, kind: input, shape index: {}]
  %s5 = inlined_call_operand.hbm [shape: f32[32,256], index: 5, kind: output, shape index: {0}]
  %s6 = inlined_call_operand.hbm [shape: f32[32,128], index: 6, kind: output, shape index: {1}]
  %7 = xla_tuple %s5, %s6
  %s8 = sld [smem:[#allocation0]]
  $region77: #{tpu_custom_call.1} parent=0
    _
  %s10 = ssub.s32 1, %s8
  %s11 = scalar_select 0, %s10, %s8
  $region1: #{tpu_custom_call.1} parent=0
    #allocation2 [shape = 'u8[16384]{0}', space=vmem, size = 0x4000, scoped, tag = 'input window, operand 0']
    #allocation3 [shape = 's32[2]{0}', space=sflag, size = 0x8, scoped, tag = 'scoped memory for tpu_custom_call.1']
    #allocation4 [shape = 's32[2]{0}', space=sflag, size = 0x8, scoped, tag = 'scoped memory for tpu_custom_call.1']
    #allocation5 [shape = 'u8[65536]{0}', space=vmem, size = 0x10000, scoped, tag = 'input window, operand 1, single buffered']
    #allocation6 [shape = 's32[1]{0}', space=sflag, size = 0x4, scoped, tag = 'scoped memory for tpu_custom_call.1']
    #allocation7 [shape = 'u8[512]{0}', space=vmem, size = 0x400, scoped, tag = 'input window, operand 2, single buffered']
    #allocation8 [shape = 'u8[16384]{0}', space=vmem, size = 0x4000, scoped, tag = 'input window, operand 4']
    #allocation9 [shape = 's32[2]{0}', space=sflag, size = 0x8, scoped, tag = 'scoped memory for tpu_custom_call.1']
    #allocation10 [shape = 'u8[32768]{0}', space=vmem, size = 0x8000, scoped, tag = 'output window, operand 0']
    #allocation11 [shape = 'u8[16384]{0}', space=vmem, size = 0x4000, scoped, tag = 'output window, operand 1']
    #allocation12 [shape = 's32[2]{0}', space=sflag, size = 0x8, scoped, tag = 'scoped memory for tpu_custom_call.1']
    %12 = vsyncpa [#allocation3], 0
    %s13 = scalar_lea.sflag [#allocation3], 1
    %14 = vsyncpa %s13, 0
    %15 = vsyncpa [#allocation6], 0
    %16 = vsyncpa [#allocation9], 0
    %s17 = scalar_lea.sflag [#allocation9], 1
    %18 = vsyncpa %s17, 0
    %19 = vsyncpa [#allocation4], 0
    %s20 = scalar_lea.sflag [#allocation4], 1
    %21 = vsyncpa %s20, 0
    %22 = vsyncpa [#allocation12], 0
    %s23 = scalar_lea.sflag [#allocation12], 1
    %24 = vsyncpa %s23, 0
    loop: start=0, step=1, limit=4
    $region2: #{tpu_custom_call.1} parent=1 // loop_pre_header
      _
    $region3: #{tpu_custom_call.1} parent=1 // loop_header
      %s26 = sphi 0, %s30
      %p27 = scmp.ge.s32.totalorder %s26, 4
      %s36 = sphi 0, %s38
      %s39 = sphi 0, %s36
      %s40 = sphi 0, %s39
      %s56 = sphi 0, %s40
      %s60 = sphi 0, %s60
      %s62 = sphi 0, %s60
      %s63 = sphi 0, %s62
      %s77 = sphi 0, %s63
      %s81 = sphi 0, %s81
      %s83 = sphi 0, %s81
      %s84 = sphi 0, %s83
      %s98 = sphi 0, %s84
      %s102 = sphi 0, %s102
      %s104 = sphi 0, %s102
      %s105 = sphi 0, %s104
      %s119 = sphi 0, %s105
      %s125 = sphi 0, %s127
      %s128 = sphi 0, %s125
      %s129 = sphi 0, %s128
      %s145 = sphi 0, %s129
      %s151 = sphi 0, %s153
      %s154 = sphi 0, %s151
      %s155 = sphi 0, %s154
      %s171 = sphi 0, %s155
      %s177 = sphi 0, %s179
      %s180 = sphi 0, %s177
      %s181 = sphi 0, %s180
      %s197 = sphi 0, %s181
    $region4: #{tpu_custom_call.1} parent=1 // loop_header_branch
      %29 = sbr.rel (%p27) target = $region8
    $region5: #{tpu_custom_call.1} parent=1 // loop_body
      %s31 = ssub.s32 %s26, 1
      %s32 = ssub.s32 %s26, 2
      %s33 = sadd.s32 %s26, 1
      %s34 = ssub.s32 %s26, %s33
      %p35 = scmp.eq.s32.totalorder %s34, 0
      %s37 = sadd.s32 %s36, 1
      %s38 = scalar_select %p35, %s36, %s37
      %p41 = pneg %p35
      %p42 = scmp.eq.s32.totalorder %s26, 1
      %p43 = por %p41, %p42
      %p44 = scmp.ne.s32.totalorder %s36, %s39
      %p45 = scmp.eq.s32.totalorder %s26, 0
      %p46 = por %p44, %p45
      %p47 = scmp.ne.s32.totalorder %s36, %s39
      %p48 = scmp.eq.s32.totalorder %s31, 1
      %p49 = por %p47, %p48
      %p50 = scmp.ne.s32.totalorder %s39, %s40
      %p51 = scmp.eq.s32.totalorder %s31, 0
      %p52 = por %p50, %p51
      %p53 = scmp.ne.s32.totalorder %s39, %s40
      %p54 = scmp.eq.s32.totalorder %s32, 1
      %p55 = por %p53, %p54
      %p57 = scmp.ne.s32.totalorder %s40, %s56
      %p58 = scmp.eq.s32.totalorder %s32, 0
      %p59 = por %p57, %p58
      %s61 = sadd.s32 %s60, 1
      %p64 = scmp.eq.s32.totalorder %s26, 1
      %p65 = scmp.ne.s32.totalorder %s60, %s62
      %p66 = scmp.eq.s32.totalorder %s26, 0
      %p67 = por %p65, %p66
      %p68 = scmp.ne.s32.totalorder %s60, %s62
      %p69 = scmp.eq.s32.totalorder %s31, 1
      %p70 = por %p68, %p69
      %p71 = scmp.ne.s32.totalorder %s62, %s63
      %p72 = scmp.eq.s32.totalorder %s31, 0
      %p73 = por %p71, %p72
      %p74 = scmp.ne.s32.totalorder %s62, %s63
      %p75 = scmp.eq.s32.totalorder %s32, 1
      %p76 = por %p74, %p75
      %p78 = scmp.ne.s32.totalorder %s63, %s77
      %p79 = scmp.eq.s32.totalorder %s32, 0
      %p80 = por %p78, %p79
      %s82 = sadd.s32 %s81, 1
      %p85 = scmp.eq.s32.totalorder %s26, 1
      %p86 = scmp.ne.s32.totalorder %s81, %s83
      %p87 = scmp.eq.s32.totalorder %s26, 0
      %p88 = por %p86, %p87
      %p89 = scmp.ne.s32.totalorder %s81, %s83
      %p90 = scmp.eq.s32.totalorder %s31, 1
      %p91 = por %p89, %p90
      %p92 = scmp.ne.s32.totalorder %s83, %s84
      %p93 = scmp.eq.s32.totalorder %s31, 0
      %p94 = por %p92, %p93
      %p95 = scmp.ne.s32.totalorder %s83, %s84
      %p96 = scmp.eq.s32.totalorder %s32, 1
      %p97 = por %p95, %p96
      %p99 = scmp.ne.s32.totalorder %s84, %s98
      %p100 = scmp.eq.s32.totalorder %s32, 0
      %p101 = por %p99, %p100
      %s103 = sadd.s32 %s102, 1
      %p106 = scmp.eq.s32.totalorder %s26, 1
      %p107 = scmp.ne.s32.totalorder %s102, %s104
      %p108 = scmp.eq.s32.totalorder %s26, 0
      %p109 = por %p107, %p108
      %p110 = scmp.ne.s32.totalorder %s102, %s104
      %p111 = scmp.eq.s32.totalorder %s31, 1
      %p112 = por %p110, %p111
      %p113 = scmp.ne.s32.totalorder %s104, %s105
      %p114 = scmp.eq.s32.totalorder %s31, 0
      %p115 = por %p113, %p114
      %p116 = scmp.ne.s32.totalorder %s104, %s105
      %p117 = scmp.eq.s32.totalorder %s32, 1
      %p118 = por %p116, %p117
      %p120 = scmp.ne.s32.totalorder %s105, %s119
      %p121 = scmp.eq.s32.totalorder %s32, 0
      %p122 = por %p120, %p121
      %s123 = ssub.s32 %s26, %s33
      %p124 = scmp.eq.s32.totalorder %s123, 0
      %s126 = sadd.s32 %s125, 1
      %s127 = scalar_select %p124, %s125, %s126
      %p130 = pneg %p124
      %p131 = scmp.eq.s32.totalorder %s26, 1
      %p132 = por %p130, %p131
      %p133 = scmp.ne.s32.totalorder %s125, %s128
      %p134 = scmp.eq.s32.totalorder %s26, 0
      %p135 = por %p133, %p134
      %p136 = scmp.ne.s32.totalorder %s125, %s128
      %p137 = scmp.eq.s32.totalorder %s31, 1
      %p138 = por %p136, %p137
      %p139 = scmp.ne.s32.totalorder %s128, %s129
      %p140 = scmp.eq.s32.totalorder %s31, 0
      %p141 = por %p139, %p140
      %p142 = scmp.ne.s32.totalorder %s128, %s129
      %p143 = scmp.eq.s32.totalorder %s32, 1
      %p144 = por %p142, %p143
      %p146 = scmp.ne.s32.totalorder %s129, %s145
      %p147 = scmp.eq.s32.totalorder %s32, 0
      %p148 = por %p146, %p147
      %s149 = ssub.s32 %s26, %s33
      %p150 = scmp.eq.s32.totalorder %s149, 0
      %s152 = sadd.s32 %s151, 1
      %s153 = scalar_select %p150, %s151, %s152
      %p156 = pneg %p150
      %p157 = scmp.eq.s32.totalorder %s26, 1
      %p158 = por %p156, %p157
      %p159 = scmp.ne.s32.totalorder %s151, %s154
      %p160 = scmp.eq.s32.totalorder %s26, 0
      %p161 = por %p159, %p160
      %p162 = scmp.ne.s32.totalorder %s151, %s154
      %p163 = scmp.eq.s32.totalorder %s31, 1
      %p164 = por %p162, %p163
      %p165 = scmp.ne.s32.totalorder %s154, %s155
      %p166 = scmp.eq.s32.totalorder %s31, 0
      %p167 = por %p165, %p166
      %p168 = scmp.ne.s32.totalorder %s154, %s155
      %p169 = scmp.eq.s32.totalorder %s32, 1
      %p170 = por %p168, %p169
      %p172 = scmp.ne.s32.totalorder %s155, %s171
      %p173 = scmp.eq.s32.totalorder %s32, 0
      %p174 = por %p172, %p173
      %s175 = ssub.s32 %s26, %s33
      %p176 = scmp.eq.s32.totalorder %s175, 0
      %s178 = sadd.s32 %s177, 1
      %s179 = scalar_select %p176, %s177, %s178
      %p182 = pneg %p176
      %p183 = scmp.eq.s32.totalorder %s26, 1
      %p184 = por %p182, %p183
      %p185 = scmp.ne.s32.totalorder %s177, %s180
      %p186 = scmp.eq.s32.totalorder %s26, 0
      %p187 = por %p185, %p186
      %p188 = scmp.ne.s32.totalorder %s177, %s180
      %p189 = scmp.eq.s32.totalorder %s31, 1
      %p190 = por %p188, %p189
      %p191 = scmp.ne.s32.totalorder %s180, %s181
      %p192 = scmp.eq.s32.totalorder %s31, 0
      %p193 = por %p191, %p192
      %p194 = scmp.ne.s32.totalorder %s180, %s181
      %p195 = scmp.eq.s32.totalorder %s32, 1
      %p196 = por %p194, %p195
      %p198 = scmp.ne.s32.totalorder %s181, %s197
      %p199 = scmp.eq.s32.totalorder %s32, 0
      %p200 = por %p198, %p199
      %p201 = scmp.le.s32.totalorder 1, %s26
      %p202 = scmp.lt.s32.totalorder %s26, 3
      %p203 = pnand %p201, %p202
      %p204 = pneg %p203
      // Predicated region
      $region9: #{tpu_custom_call.1} parent=5 // pred_check
        _
      $region10: #{tpu_custom_call.1} parent=5 // pred_check_branch
        %206 = sbr.rel (%p203) target = $region12
      $region11: #{tpu_custom_call.1} parent=5 // pred_region
        %s207 = ssub.s32 %s26, 1
        // Predicated region
        $region13: #{tpu_custom_call.1} parent=11 // pred_check
          %p208 = pneg %p73
        $region14: #{tpu_custom_call.1} parent=11 // pred_check_branch
          %210 = sbr.rel (%p208) target = $region16
        $region15: #{tpu_custom_call.1} parent=11 // pred_region
          %212 = vsyncadd [#allocation6], 0
          %s213 = sshll.u32 %s1, 4
          %s214 = int_to_ptr.hbm [resolvable:$true] %s213
          %s215 = sshll.u32 [#allocation5], 4
          %s216 = int_to_ptr.vmem [resolvable:$true] %s215
          %221 = dma.hbm_to_vmem [thread:$0]  %s214, 2048, %s216, [#allocation6], 64, 64, 4
        $region16: #{tpu_custom_call.1} parent=11 // pred_fallthru
          _
        // Predicated region
        $region17: #{tpu_custom_call.1} parent=11 // pred_check
          %p222 = pneg %p94
        $region18: #{tpu_custom_call.1} parent=11 // pred_check_branch
          %224 = sbr.rel (%p222) target = $region20
        $region19: #{tpu_custom_call.1} parent=11 // pred_region
          %226 = vsyncadd [#allocation6], 0
          %s228 = sshll.u32 %s2, 4
          %s229 = int_to_ptr.hbm [resolvable:$true] %s228
          %s230 = sshll.u32 [#allocation7], 4
          %s231 = int_to_ptr.vmem [resolvable:$true] %s230
          %233 = dma.hbm_to_vmem [thread:$0]  %s229, 16, %s231, [#allocation6]
        $region20: #{tpu_custom_call.1} parent=11 // pred_fallthru
          _
        // Predicated region
        $region21: #{tpu_custom_call.1} parent=11 // pred_check
          %p234 = pneg %p115
        $region22: #{tpu_custom_call.1} parent=11 // pred_check_branch
          %236 = sbr.rel (%p234) target = $region24
        $region23: #{tpu_custom_call.1} parent=11 // pred_region
          _
        $region24: #{tpu_custom_call.1} parent=11 // pred_fallthru
          _
      $region12: #{tpu_custom_call.1} parent=5 // pred_fallthru
        _
      %p237 = scmp.lt.s32.totalorder %s26, 2
      // Predicated region
      $region25: #{tpu_custom_call.1} parent=5 // pred_check
        %p238 = pneg %p237
      $region26: #{tpu_custom_call.1} parent=5 // pred_check_branch
        %240 = sbr.rel (%p238) target = $region28
      $region27: #{tpu_custom_call.1} parent=5 // pred_region
        // Predicated region
        $region29: #{tpu_custom_call.1} parent=27 // pred_check
          %p241 = pneg %p46
        $region30: #{tpu_custom_call.1} parent=27 // pred_check_branch
          %243 = sbr.rel (%p241) target = $region32
        $region31: #{tpu_custom_call.1} parent=27 // pred_region
          %s244 = sand.u32 %s36, 1
          %s245 = scalar_lea.sflag [#allocation3], %s244
          %s246 = sand.u32 %s36, 1
          %s247 = smul.addr %s246, 16
          %s248 = scalar_lea.vmem [#allocation2], %s247
          %s249 = smul.u32 2, %s26
          %251 = vsyncadd %s245, 0
          %s252 = smul.addr %s249, 2
          %s253 = smul.addr %s252, 4
          %s254 = scalar_lea.hbm %s0, %s253
          %s255 = sshll.u32 %s254, 4
          %s256 = int_to_ptr.hbm [resolvable:$true] %s255
          %s257 = sshll.u32 %s248, 4
          %s258 = int_to_ptr.vmem [resolvable:$true] %s257
          %263 = dma.hbm_to_vmem [thread:$0]  %s256, 256, %s258, %s245, 128, 128, 8
        $region32: #{tpu_custom_call.1} parent=27 // pred_fallthru
          _
        // Predicated region
        $region33: #{tpu_custom_call.1} parent=27 // pred_check
          %p264 = pneg %p135
        $region34: #{tpu_custom_call.1} parent=27 // pred_check_branch
          %266 = sbr.rel (%p264) target = $region36
        $region35: #{tpu_custom_call.1} parent=27 // pred_region
          %s267 = sand.u32 %s125, 1
          %s268 = scalar_lea.sflag [#allocation9], %s267
          %s269 = sand.u32 %s125, 1
          %s270 = smul.addr %s269, 16
          %s271 = scalar_lea.vmem [#allocation8], %s270
          %s272 = smul.u32 2, %s26
          %274 = vsyncadd %s268, 0
          %s275 = smul.addr %s272, 8
          %s276 = scalar_lea.hbm %s4, %s275
          %s277 = sshll.u32 %s276, 4
          %s278 = int_to_ptr.hbm [resolvable:$true] %s277
          %s279 = sshll.u32 %s271, 4
          %s280 = int_to_ptr.vmem [resolvable:$true] %s279
          %285 = dma.hbm_to_vmem [thread:$0]  %s278, 256, %s280, %s268, 128, 128, 8
        $region36: #{tpu_custom_call.1} parent=27 // pred_fallthru
          _
      $region28: #{tpu_custom_call.1} parent=5 // pred_fallthru
        _
      %p286 = scmp.le.s32.totalorder 1, %s26
      %p287 = scmp.lt.s32.totalorder %s26, 3
      %p288 = pnand %p286, %p287
      %p289 = pneg %p288
      // Predicated region
      $region37: #{tpu_custom_call.1} parent=5 // pred_check
        _
      $region38: #{tpu_custom_call.1} parent=5 // pred_check_branch
        %291 = sbr.rel (%p288) target = $region40
      $region39: #{tpu_custom_call.1} parent=5 // pred_region
        %s292 = ssub.s32 %s26, 1
        %s293 = sand.u32 %s39, 1
        %s294 = scalar_lea.sflag [#allocation3], %s293
        %s295 = sand.u32 %s39, 1
        %s296 = smul.addr %s295, 16
        %s297 = scalar_lea.vmem [#allocation2], %s296
        // Predicated region
        $region41: #{tpu_custom_call.1} parent=39 // pred_check
          %p298 = pneg %p52
        $region42: #{tpu_custom_call.1} parent=39 // pred_check_branch
          %300 = sbr.rel (%p298) target = $region44
        $region43: #{tpu_custom_call.1} parent=39 // pred_region
          %302 = dma.done %s294, 256
        $region44: #{tpu_custom_call.1} parent=39 // pred_fallthru
          _
        // Predicated region
        $region45: #{tpu_custom_call.1} parent=39 // pred_check
          %p303 = pneg %p73
        $region46: #{tpu_custom_call.1} parent=39 // pred_check_branch
          %305 = sbr.rel (%p303) target = $region48
        $region47: #{tpu_custom_call.1} parent=39 // pred_region
          %307 = dma.done [#allocation6], 2048
        $region48: #{tpu_custom_call.1} parent=39 // pred_fallthru
          _
        // Predicated region
        $region49: #{tpu_custom_call.1} parent=39 // pred_check
          %p308 = pneg %p94
        $region50: #{tpu_custom_call.1} parent=39 // pred_check_branch
          %310 = sbr.rel (%p308) target = $region52
        $region51: #{tpu_custom_call.1} parent=39 // pred_region
          %312 = dma.done [#allocation6], 16
        $region52: #{tpu_custom_call.1} parent=39 // pred_fallthru
          _
        %s313 = sand.u32 %s128, 1
        %s314 = scalar_lea.sflag [#allocation9], %s313
        %s315 = sand.u32 %s128, 1
        %s316 = smul.addr %s315, 16
        %s317 = scalar_lea.vmem [#allocation8], %s316
        // Predicated region
        $region53: #{tpu_custom_call.1} parent=39 // pred_check
          %p318 = pneg %p141
        $region54: #{tpu_custom_call.1} parent=39 // pred_check_branch
          %320 = sbr.rel (%p318) target = $region56
        $region55: #{tpu_custom_call.1} parent=39 // pred_region
          %322 = dma.done %s314, 256
        $region56: #{tpu_custom_call.1} parent=39 // pred_fallthru
          _
        %s323 = sand.u32 %s39, 1
        %s324 = scalar_lea.sflag [#allocation3], %s323
        %s325 = sand.u32 %s39, 1
        %s326 = smul.addr %s325, 16
        %s327 = scalar_lea.vmem [#allocation2], %s326
        %p328 = pneg %p52
        %p329 = pneg %p49
        %p330 = pneg %p73
        %p331 = pneg %p70
        %p332 = pneg %p94
        %p333 = pneg %p91
        %p334 = pneg %p115
        %p335 = pneg %p112
        %s336 = sand.u32 %s128, 1
        %s337 = scalar_lea.sflag [#allocation9], %s336
        %s338 = sand.u32 %s128, 1
        %s339 = smul.addr %s338, 16
        %s340 = scalar_lea.vmem [#allocation8], %s339
        %p341 = pneg %p141
        %p342 = pneg %p138
        %p343 = pneg %p167
        %p344 = pneg %p164
        %s345 = sand.u32 %s154, 1
        %s346 = scalar_lea.sflag [#allocation4], %s345
        %s347 = sand.u32 %s154, 1
        %s348 = smul.addr %s347, 32
        %s349 = scalar_lea.vmem [#allocation10], %s348
        %p350 = pneg %p193
        %p351 = pneg %p190
        %s352 = sand.u32 %s180, 1
        %s353 = scalar_lea.sflag [#allocation12], %s352
        %s354 = sand.u32 %s180, 1
        %s355 = smul.addr %s354, 16
        %s356 = scalar_lea.vmem [#allocation11], %s355
        %s357 = smul.u32 2, %s31
        %s358 = smul.u32 2, %s31
        %s359 = smul.u32 2, %s31
        %s360 = smul.u32 2, %s31
        %v361 = vld [vmem:[%s297] sm:$0xff]
        %v362 = vld [vmem:[%s297 + $0x8] sm:$0xff]
        %v363 = vld [vmem:[#allocation5] sm:$0xf]
        %v364 = vld [vmem:[#allocation5 + $0x4] sm:$0xf]
        %v365 = vld [vmem:[#allocation5 + $0x8] sm:$0xf]
        %v366 = vld [vmem:[#allocation5 + $0xc] sm:$0xf]
        %v367 = vld [vmem:[#allocation5 + $0x10] sm:$0xf]
        %v368 = vld [vmem:[#allocation5 + $0x14] sm:$0xf]
        %v369 = vld [vmem:[#allocation5 + $0x18] sm:$0xf]
        %v370 = vld [vmem:[#allocation5 + $0x1c] sm:$0xf]
        %v371 = vld [vmem:[#allocation5 + $0x20] sm:$0xf]
        %v372 = vld [vmem:[#allocation5 + $0x24] sm:$0xf]
        %v373 = vld [vmem:[#allocation5 + $0x28] sm:$0xf]
        %v374 = vld [vmem:[#allocation5 + $0x2c] sm:$0xf]
        %v375 = vld [vmem:[#allocation5 + $0x30] sm:$0xf]
        %v376 = vld [vmem:[#allocation5 + $0x34] sm:$0xf]
        %v377 = vld [vmem:[#allocation5 + $0x38] sm:$0xf]
        %v378 = vld [vmem:[#allocation5 + $0x3c] sm:$0xf]
        %v379 = vld [vmem:[#allocation5 + $0x40] sm:$0xf]
        %v380 = vld [vmem:[#allocation5 + $0x44] sm:$0xf]
        %v381 = vld [vmem:[#allocation5 + $0x48] sm:$0xf]
        %v382 = vld [vmem:[#allocation5 + $0x4c] sm:$0xf]
        %v383 = vld [vmem:[#allocation5 + $0x50] sm:$0xf]
        %v384 = vld [vmem:[#allocation5 + $0x54] sm:$0xf]
        %v385 = vld [vmem:[#allocation5 + $0x58] sm:$0xf]
        %v386 = vld [vmem:[#allocation5 + $0x5c] sm:$0xf]
        %v387 = vld [vmem:[#allocation5 + $0x60] sm:$0xf]
        %v388 = vld [vmem:[#allocation5 + $0x64] sm:$0xf]
        %v389 = vld [vmem:[#allocation5 + $0x68] sm:$0xf]
        %v390 = vld [vmem:[#allocation5 + $0x6c] sm:$0xf]
        %v391 = vld [vmem:[#allocation5 + $0x70] sm:$0xf]
        %v392 = vld [vmem:[#allocation5 + $0x74] sm:$0xf]
        %v393 = vld [vmem:[#allocation5 + $0x78] sm:$0xf]
        %v394 = vld [vmem:[#allocation5 + $0x7c] sm:$0xf]
        %v395 = vld [vmem:[#allocation7] sm:$0x1]
        %v397 = vperm.slane %v395, 0
        %v401 = vunpack.c.l.b16 %v361
        %v402 = vunpack.c.h.b16 %v361
        %v403 = vunpack.c.l.b16 %v362
        %v404 = vunpack.c.h.b16 %v362
        %v405 = vpack.c.b16 %v403, %v401
        %v406 = vpack.c.b16 %v404, %v402
        %v441 = vunpack.c.l.b16 %v363
        %v442 = vunpack.c.l.b16 %v364
        %v443 = vunpack.c.l.b16 %v365
        %v444 = vunpack.c.l.b16 %v366
        %v445 = vunpack.c.l.b16 %v367
        %v446 = vunpack.c.l.b16 %v368
        %v447 = vunpack.c.l.b16 %v369
        %v448 = vunpack.c.l.b16 %v370
        %v449 = vunpack.c.l.b16 %v371
        %v450 = vunpack.c.l.b16 %v372
        %v451 = vunpack.c.l.b16 %v373
        %v452 = vunpack.c.l.b16 %v374
        %v453 = vunpack.c.l.b16 %v375
        %v454 = vunpack.c.l.b16 %v376
        %v455 = vunpack.c.l.b16 %v377
        %v456 = vunpack.c.l.b16 %v378
        %v457 = vunpack.c.l.b16 %v379
        %v458 = vunpack.c.l.b16 %v380
        %v459 = vunpack.c.l.b16 %v381
        %v460 = vunpack.c.l.b16 %v382
        %v461 = vunpack.c.l.b16 %v383
        %v462 = vunpack.c.l.b16 %v384
        %v463 = vunpack.c.l.b16 %v385
        %v464 = vunpack.c.l.b16 %v386
        %v465 = vunpack.c.l.b16 %v387
        %v466 = vunpack.c.l.b16 %v388
        %v467 = vunpack.c.l.b16 %v389
        %v468 = vunpack.c.l.b16 %v390
        %v469 = vunpack.c.l.b16 %v391
        %v470 = vunpack.c.l.b16 %v392
        %v471 = vunpack.c.l.b16 %v393
        %v472 = vunpack.c.l.b16 %v394
        %v473 = vpack.c.b16 %v442, %v441
        %v474 = vpack.c.b16 %v444, %v443
        %v475 = vpack.c.b16 %v446, %v445
        %v476 = vpack.c.b16 %v448, %v447
        %v477 = vpack.c.b16 %v450, %v449
        %v478 = vpack.c.b16 %v452, %v451
        %v479 = vpack.c.b16 %v454, %v453
        %v480 = vpack.c.b16 %v456, %v455
        %v481 = vpack.c.b16 %v458, %v457
        %v482 = vpack.c.b16 %v460, %v459
        %v483 = vpack.c.b16 %v462, %v461
        %v484 = vpack.c.b16 %v464, %v463
        %v485 = vpack.c.b16 %v466, %v465
        %v486 = vpack.c.b16 %v468, %v467
        %v487 = vpack.c.b16 %v470, %v469
        %v488 = vpack.c.b16 %v472, %v471
        %505 = vmatpush.bf16.msra.mxu0 %v480
        %506 = vmatpush.bf16.msra.mxu0 %v479
        %507 = vmatpush.bf16.msra.mxu0 %v478
        %508 = vmatpush.bf16.msra.mxu0 %v477
        %509 = vmatpush.bf16.msra.mxu0 %v476
        %510 = vmatpush.bf16.msra.mxu0 %v475
        %511 = vmatpush.bf16.msra.mxu0 %v474
        %512 = vmatpush.bf16.msra.mxu0 %v473
        %513 = vmatmul.bf16.gmra.mxu0 %v405
        %v514 = vpop.f32.mrf.mxu0
        %v515 = vadd.f32 %v397, %v514
        %v516 = vpop.f32.mrf.mxu0
        %v517 = vadd.f32 %v397, %v516
        %518 = vdwg.mxu0
        %519 = vmatpush.bf16.msra.mxu0 %v488
        %520 = vmatpush.bf16.msra.mxu0 %v487
        %521 = vmatpush.bf16.msra.mxu0 %v486
        %522 = vmatpush.bf16.msra.mxu0 %v485
        %523 = vmatpush.bf16.msra.mxu0 %v484
        %524 = vmatpush.bf16.msra.mxu0 %v483
        %525 = vmatpush.bf16.msra.mxu0 %v482
        %526 = vmatpush.bf16.msra.mxu0 %v481
        %527 = vmatmul.bf16.gmra.mxu0 %v406
        %v528 = vpop.f32.mrf.mxu0
        %v529 = vadd.f32 %v515, %v528
        %v530 = vpop.f32.mrf.mxu0
        %v531 = vadd.f32 %v517, %v530
        %532 = vdwg.mxu0
        %v533 = vmul.f32 %v529, 0.5
        %v534 = vmul.f32 %v531, 0.5
        %v535 = vtanh.pop %v533
        %v536 = vtanh.pop %v534
        %v537 = vadd.f32 %v535, 1.0
        %v538 = vadd.f32 %v536, 1.0
        %v539 = vmul.f32 %v537, 0.5
        %v540 = vmul.f32 %v538, 0.5
        %v541 = vld [vmem:[%s317] sm:$0xff]
        %v542 = vld [vmem:[%s317 + $0x8] sm:$0xff]
        %vm543 = vcmp.lt.f32.partialorder %v541, %v539
        %vm544 = vcmp.lt.f32.partialorder %v542, %v540
        %v545 = vsel %vm543, 1, 0
        %v546 = vsel %vm544, 1, 0
        %v547 = vcvt.s32.f32 %v545
        %v548 = vcvt.s32.f32 %v546
        %549 = vst [vmem:[%s356] sm:$0xff] %v547
        %550 = vst [vmem:[%s356 + $0x8] sm:$0xff] %v548
        %v551 = vpack.c.bf16 %v548, %v547
        %v552 = vld [vmem:[#allocation5] sm:$0xf]
        %v553 = vld [vmem:[#allocation5 + $0x4] sm:$0xf]
        %v554 = vld [vmem:[#allocation5 + $0x8] sm:$0xf]
        %v555 = vld [vmem:[#allocation5 + $0xc] sm:$0xf]
        %v556 = vld [vmem:[#allocation5 + $0x10] sm:$0xf]
        %v557 = vld [vmem:[#allocation5 + $0x14] sm:$0xf]
        %v558 = vld [vmem:[#allocation5 + $0x18] sm:$0xf]
        %v559 = vld [vmem:[#allocation5 + $0x1c] sm:$0xf]
        %v560 = vld [vmem:[#allocation5 + $0x20] sm:$0xf]
        %v561 = vld [vmem:[#allocation5 + $0x24] sm:$0xf]
        %v562 = vld [vmem:[#allocation5 + $0x28] sm:$0xf]
        %v563 = vld [vmem:[#allocation5 + $0x2c] sm:$0xf]
        %v564 = vld [vmem:[#allocation5 + $0x30] sm:$0xf]
        %v565 = vld [vmem:[#allocation5 + $0x34] sm:$0xf]
        %v566 = vld [vmem:[#allocation5 + $0x38] sm:$0xf]
        %v567 = vld [vmem:[#allocation5 + $0x3c] sm:$0xf]
        %v568 = vld [vmem:[#allocation5 + $0x40] sm:$0xf]
        %v569 = vld [vmem:[#allocation5 + $0x44] sm:$0xf]
        %v570 = vld [vmem:[#allocation5 + $0x48] sm:$0xf]
        %v571 = vld [vmem:[#allocation5 + $0x4c] sm:$0xf]
        %v572 = vld [vmem:[#allocation5 + $0x50] sm:$0xf]
        %v573 = vld [vmem:[#allocation5 + $0x54] sm:$0xf]
        %v574 = vld [vmem:[#allocation5 + $0x58] sm:$0xf]
        %v575 = vld [vmem:[#allocation5 + $0x5c] sm:$0xf]
        %v576 = vld [vmem:[#allocation5 + $0x60] sm:$0xf]
        %v577 = vld [vmem:[#allocation5 + $0x64] sm:$0xf]
        %v578 = vld [vmem:[#allocation5 + $0x68] sm:$0xf]
        %v579 = vld [vmem:[#allocation5 + $0x6c] sm:$0xf]
        %v580 = vld [vmem:[#allocation5 + $0x70] sm:$0xf]
        %v581 = vld [vmem:[#allocation5 + $0x74] sm:$0xf]
        %v582 = vld [vmem:[#allocation5 + $0x78] sm:$0xf]
        %v583 = vld [vmem:[#allocation5 + $0x7c] sm:$0xf]
        %v584 = vld [vmem:[%s3] sm:$0x3]
        %v586 = vperm.slane %v584, 0
        %v587 = vperm.slane %v584, 1
        %v622 = vunpack.c.l.b16 %v552
        %v623 = vunpack.c.l.b16 %v553
        %v624 = vunpack.c.l.b16 %v554
        %v625 = vunpack.c.l.b16 %v555
        %v626 = vunpack.c.l.b16 %v556
        %v627 = vunpack.c.l.b16 %v557
        %v628 = vunpack.c.l.b16 %v558
        %v629 = vunpack.c.l.b16 %v559
        %v630 = vunpack.c.l.b16 %v560
        %v631 = vunpack.c.l.b16 %v561
        %v632 = vunpack.c.l.b16 %v562
        %v633 = vunpack.c.l.b16 %v563
        %v634 = vunpack.c.l.b16 %v564
        %v635 = vunpack.c.l.b16 %v565
        %v636 = vunpack.c.l.b16 %v566
        %v637 = vunpack.c.l.b16 %v567
        %v638 = vunpack.c.l.b16 %v568
        %v639 = vunpack.c.l.b16 %v569
        %v640 = vunpack.c.l.b16 %v570
        %v641 = vunpack.c.l.b16 %v571
        %v642 = vunpack.c.l.b16 %v572
        %v643 = vunpack.c.l.b16 %v573
        %v644 = vunpack.c.l.b16 %v574
        %v645 = vunpack.c.l.b16 %v575
        %v646 = vunpack.c.l.b16 %v576
        %v647 = vunpack.c.l.b16 %v577
        %v648 = vunpack.c.l.b16 %v578
        %v649 = vunpack.c.l.b16 %v579
        %v650 = vunpack.c.l.b16 %v580
        %v651 = vunpack.c.l.b16 %v581
        %v652 = vunpack.c.l.b16 %v582
        %v653 = vunpack.c.l.b16 %v583
        %v654 = vpack.c.b16 %v623, %v622
        %v655 = vpack.c.b16 %v625, %v624
        %v656 = vpack.c.b16 %v627, %v626
        %v657 = vpack.c.b16 %v629, %v628
        %v658 = vpack.c.b16 %v631, %v630
        %v659 = vpack.c.b16 %v633, %v632
        %v660 = vpack.c.b16 %v635, %v634
        %v661 = vpack.c.b16 %v637, %v636
        %v662 = vpack.c.b16 %v639, %v638
        %v663 = vpack.c.b16 %v641, %v640
        %v664 = vpack.c.b16 %v643, %v642
        %v665 = vpack.c.b16 %v645, %v644
        %v666 = vpack.c.b16 %v647, %v646
        %v667 = vpack.c.b16 %v649, %v648
        %v668 = vpack.c.b16 %v651, %v650
        %v669 = vpack.c.b16 %v653, %v652
        %686 = vmatpush.bf16.xpose.msra.mxu0 %v661
        %687 = vmatpush.bf16.xpose.msra.mxu0 %v660
        %688 = vmatpush.bf16.xpose.msra.mxu0 %v659
        %689 = vmatpush.bf16.xpose.msra.mxu0 %v658
        %690 = vmatpush.bf16.xpose.msra.mxu0 %v657
        %691 = vmatpush.bf16.xpose.msra.mxu0 %v656
        %692 = vmatpush.bf16.xpose.msra.mxu0 %v655
        %693 = vmatpush.bf16.xpose.msra.mxu0 %v654
        %694 = vmatmul.bf16.gmra.mxu0 %v551
        %v695 = vpop.f32.mrf.mxu0
        %v696 = vadd.f32 %v586, %v695
        %v697 = vpop.f32.mrf.mxu0
        %v698 = vadd.f32 %v586, %v697
        %699 = vdwg.mxu0
        %700 = vmatpush.bf16.xpose.msra.mxu0 %v669
        %701 = vmatpush.bf16.xpose.msra.mxu0 %v668
        %702 = vmatpush.bf16.xpose.msra.mxu0 %v667
        %703 = vmatpush.bf16.xpose.msra.mxu0 %v666
        %704 = vmatpush.bf16.xpose.msra.mxu0 %v665
        %705 = vmatpush.bf16.xpose.msra.mxu0 %v664
        %706 = vmatpush.bf16.xpose.msra.mxu0 %v663
        %707 = vmatpush.bf16.xpose.msra.mxu0 %v662
        %708 = vmatmul.bf16.gmra.mxu0 %v551
        %v709 = vpop.f32.mrf.mxu0
        %v710 = vadd.f32 %v587, %v709
        %v711 = vpop.f32.mrf.mxu0
        %v712 = vadd.f32 %v587, %v711
        %713 = vdwg.mxu0
        %v714 = vmul.f32 %v696, 0.5
        %v715 = vmul.f32 %v710, 0.5
        %v716 = vmul.f32 %v698, 0.5
        %v717 = vmul.f32 %v712, 0.5
        %v718 = vtanh.pop %v714
        %v719 = vtanh.pop %v715
        %v720 = vtanh.pop %v716
        %v721 = vtanh.pop %v717
        %v722 = vadd.f32 %v718, 1.0
        %v723 = vadd.f32 %v719, 1.0
        %v724 = vadd.f32 %v720, 1.0
        %v725 = vadd.f32 %v721, 1.0
        %v726 = vmul.f32 %v722, 0.5
        %v727 = vmul.f32 %v723, 0.5
        %v728 = vmul.f32 %v724, 0.5
        %v729 = vmul.f32 %v725, 0.5
        %730 = vst [vmem:[%s349] sm:$0xff] %v726
        %731 = vst [vmem:[%s349 + $0x8] sm:$0xff] %v727
        %732 = vst [vmem:[%s349 + $0x10] sm:$0xff] %v728
        %733 = vst [vmem:[%s349 + $0x18] sm:$0xff] %v729
        %s734 = sand.u32 %s154, 1
        %s735 = scalar_lea.sflag [#allocation4], %s734
        %s736 = sand.u32 %s154, 1
        %s737 = smul.addr %s736, 32
        %s738 = scalar_lea.vmem [#allocation10], %s737
        %s739 = sand.u32 %s180, 1
        %s740 = scalar_lea.sflag [#allocation12], %s739
        %s741 = sand.u32 %s180, 1
        %s742 = smul.addr %s741, 16
        %s743 = scalar_lea.vmem [#allocation11], %s742
        // Predicated region
        $region57: #{tpu_custom_call.1} parent=39 // pred_check
          %p744 = pneg %p164
        $region58: #{tpu_custom_call.1} parent=39 // pred_check_branch
          %746 = sbr.rel (%p744) target = $region60
        $region59: #{tpu_custom_call.1} parent=39 // pred_region
          %s747 = smul.u32 2, %s31
          %749 = vsyncadd %s735, 0
          %s750 = smul.addr %s747, 2
          %s751 = smul.addr %s750, 8
          %s752 = scalar_lea.hbm %s5, %s751
          %s753 = sshll.u32 %s738, 4
          %s754 = int_to_ptr.vmem [resolvable:$true] %s753
          %s755 = sshll.u32 %s752, 4
          %s756 = int_to_ptr.hbm [resolvable:$true] %s755
          %761 = dma.vmem_to_hbm [thread:$0]  %s754, 512, %s756, %s735, 256, 256, 16
        $region60: #{tpu_custom_call.1} parent=39 // pred_fallthru
          _
        // Predicated region
        $region61: #{tpu_custom_call.1} parent=39 // pred_check
          %p762 = pneg %p190
        $region62: #{tpu_custom_call.1} parent=39 // pred_check_branch
          %764 = sbr.rel (%p762) target = $region64
        $region63: #{tpu_custom_call.1} parent=39 // pred_region
          %s765 = smul.u32 2, %s31
          %767 = vsyncadd %s740, 0
          %s768 = smul.addr %s765, 8
          %s769 = scalar_lea.hbm %s6, %s768
          %s770 = sshll.u32 %s743, 4
          %s771 = int_to_ptr.vmem [resolvable:$true] %s770
          %s772 = sshll.u32 %s769, 4
          %s773 = int_to_ptr.hbm [resolvable:$true] %s772
          %778 = dma.vmem_to_hbm [thread:$0]  %s771, 256, %s773, %s740, 128, 128, 8
        $region64: #{tpu_custom_call.1} parent=39 // pred_fallthru
          _
      $region40: #{tpu_custom_call.1} parent=5 // pred_fallthru
        _
      %p779 = scmp.le.s32.totalorder 2, %s26
      // Predicated region
      $region65: #{tpu_custom_call.1} parent=5 // pred_check
        %p780 = pneg %p779
      $region66: #{tpu_custom_call.1} parent=5 // pred_check_branch
        %782 = sbr.rel (%p780) target = $region68
      $region67: #{tpu_custom_call.1} parent=5 // pred_region
        %s783 = ssub.s32 %s26, 2
        // Predicated region
        $region69: #{tpu_custom_call.1} parent=67 // pred_check
          %p784 = pneg %p170
        $region70: #{tpu_custom_call.1} parent=67 // pred_check_branch
          %786 = sbr.rel (%p784) target = $region72
        $region71: #{tpu_custom_call.1} parent=67 // pred_region
          %s787 = sand.u32 %s155, 1
          %s788 = scalar_lea.sflag [#allocation4], %s787
          %s789 = sand.u32 %s155, 1
          %s790 = smul.addr %s789, 32
          %s791 = scalar_lea.vmem [#allocation10], %s790
          %793 = dma.done %s788, 512
        $region72: #{tpu_custom_call.1} parent=67 // pred_fallthru
          _
        // Predicated region
        $region73: #{tpu_custom_call.1} parent=67 // pred_check
          %p794 = pneg %p196
        $region74: #{tpu_custom_call.1} parent=67 // pred_check_branch
          %796 = sbr.rel (%p794) target = $region76
        $region75: #{tpu_custom_call.1} parent=67 // pred_region
          %s797 = sand.u32 %s181, 1
          %s798 = scalar_lea.sflag [#allocation12], %s797
          %s799 = sand.u32 %s181, 1
          %s800 = smul.addr %s799, 16
          %s801 = scalar_lea.vmem [#allocation11], %s800
          %803 = dma.done %s798, 256
        $region76: #{tpu_custom_call.1} parent=67 // pred_fallthru
          _
      $region68: #{tpu_custom_call.1} parent=5 // pred_fallthru
        _
    $region6: #{tpu_custom_call.1} parent=1 // loop_footer
      %s30 = sadd.s32 1, %s26
    $region7: #{tpu_custom_call.1} parent=1 // loop_footer_branch
      %25 = sbr.rel target = $region3
    $region8: #{tpu_custom_call.1} parent=1 // loop_exit
      _
    %804 = vsyncpa [#allocation3], 1
    %s805 = scalar_lea.sflag [#allocation3], 1
    %806 = vsyncpa %s805, 1
    %807 = vsyncpa [#allocation6], 1
    %808 = vsyncpa [#allocation9], 1
    %s809 = scalar_lea.sflag [#allocation9], 1
    %810 = vsyncpa %s809, 1
    %811 = vsyncpa [#allocation4], 1
    %s812 = scalar_lea.sflag [#allocation4], 1
    %813 = vsyncpa %s812, 1
    %814 = vsyncpa [#allocation12], 1
    %s815 = scalar_lea.sflag [#allocation12], 1
    %816 = vsyncpa %s815, 1

</llo_original>
